<compile_context>
chip_gen: v7x
topology: tpu7x:2x2x1
jax: 0.10.0
libtpu: 0.0.40
codegen_flags: <defaults>
</compile_context>

<pallas_src>
import functools

import jax
import jax.numpy as jnp
from jax.experimental import pallas as pl
from jax.experimental.pallas import tpu as pltpu


def _round_up(x, m):
    return ((x + m - 1) // m) * m


def _euclid_attn_kernel(q_ref, k_ref, kk_ref, v_ref, out_ref, score_ref, *, topk, kpad):
    q = q_ref[...]        # (tq, Dp)  f32
    k = k_ref[...]        # (Nkp, Dp) f32, resident
    kk = kk_ref[...]      # (1, Nkp)  f32, hoisted ||k||^2 (+1e30 bias on padded keys)
    v = v_ref[...]        # (Nkp, Dvp) f32, resident

    tq = q.shape[0]
    nkp = k.shape[0]

    # Pairwise squared distance via ||q||^2 + ||k||^2 - 2 q.k (MXU for the cross term).
    qq = jnp.sum(q * q, axis=1, keepdims=True)                              # (tq, 1)
    qk = jax.lax.dot_general(q, k, (((1,), (1,)), ((), ())),
                             preferred_element_type=jnp.float32)            # (tq, Nkp)
    neg_d2 = -jnp.maximum(qq + kk - 2.0 * qk, 0.0)                          # (tq, Nkp)

    col_ids = jax.lax.broadcasted_iota(jnp.int32, (tq, nkp), 1)
    k_iota = jax.lax.broadcasted_iota(jnp.int32, (tq, kpad), 1)

    # Fused top-K + softmax-numerator + scatter: single dense accumulator, no per-step
    # one-hot lists.  Top-K is done on -d^2 (same ordering as -dist); only the K
    # selected values get a sqrt.
    work = neg_d2
    attn_un = jnp.zeros((tq, nkp), dtype=jnp.float32)
    score_un = jnp.zeros((tq, kpad), dtype=jnp.float32)
    denom = jnp.zeros((tq, 1), dtype=jnp.float32)
    m = jnp.zeros((tq, 1), dtype=jnp.float32)

    for t in range(topk):
        row_max = jnp.max(work, axis=1, keepdims=True)                      # (tq, 1) = -d^2 sel
        is_max = work == row_max
        # tie-break: smallest column index among maxima (matches sorted top-k order)
        sel_idx = jnp.min(jnp.where(is_max, col_ids, nkp), axis=1, keepdims=True)
        onehot = col_ids == sel_idx                                          # (tq, Nkp)

        neg_dist_t = -jnp.sqrt(jnp.maximum(-row_max, 0.0))                   # (tq, 1), K sqrts/row
        if t == 0:
            m = neg_dist_t
            e = jnp.ones((tq, 1), dtype=jnp.float32)                         # exp(0) exactly
        else:
            e = jnp.exp(neg_dist_t - m)

        denom = denom + e
        attn_un = attn_un + jnp.where(onehot, e, 0.0)
        score_un = score_un + jnp.where(k_iota == t, e, 0.0)
        if t + 1 < topk:
            work = jnp.where(onehot, -jnp.inf, work)

    # Softmax normalization: EUP approximate reciprocal + one Newton step.
    inv = pl.reciprocal(denom, approx=True)
    inv = inv * (2.0 - denom * inv)

    attn = attn_un * inv                                                     # (tq, Nkp)
    out = jnp.dot(attn, v, preferred_element_type=jnp.float32)               # (tq, Dvp), MXU

    out_ref[...] = out.astype(out_ref.dtype)
    score_ref[...] = (score_un * inv).astype(score_ref.dtype)


def euclidean_attention(query, key, value, *, topk, tq=256):
    """query (Nq, D), key (Nk, D), value (Nk, Dv) -> (out (Nq, Dv), score (Nq, topk))."""
    nq, d = query.shape
    nk, dv = value.shape
    assert key.shape == (nk, d)
    assert topk <= nk, "topk must not exceed the number of keys"

    # Lane/MXU padding: 128-aligned feature, key, value and score dims.
    dp = _round_up(d, 128)
    nkp = _round_up(nk, 128)
    dvp = _round_up(dv, 128)
    kpad = _round_up(topk, 128)
    tq_eff = min(tq, _round_up(nq, 8))
    nqp = _round_up(nq, tq_eff)

    qf = jnp.asarray(query, jnp.float32)
    kf = jnp.asarray(key, jnp.float32)
    vf = jnp.asarray(value, jnp.float32)

    q_p = jnp.pad(qf, ((0, nqp - nq), (0, dp - d)))
    k_p = jnp.pad(kf, ((0, nkp - nk), (0, dp - d)))
    v_p = jnp.pad(vf, ((0, nkp - nk), (0, dvp - dv)))

    # Hoisted key squared norms; padded keys get a huge positive bias so -d^2 = -1e30
    # and they can never be selected by the top-K.
    kk = jnp.sum(k_p * k_p, axis=1)
    kk = kk + jnp.where(jnp.arange(nkp) >= nk, jnp.float32(1e30), jnp.float32(0.0))
    kk = kk.reshape(1, nkp).astype(jnp.float32)

    kernel = functools.partial(_euclid_attn_kernel, topk=topk, kpad=kpad)

    out_p, score_p = pl.pallas_call(
        kernel,
        out_shape=(
            jax.ShapeDtypeStruct((nqp, dvp), jnp.float32),
            jax.ShapeDtypeStruct((nqp, kpad), jnp.float32),
        ),
        grid=(nqp // tq_eff,),
        in_specs=[
            pl.BlockSpec((tq_eff, dp), lambda i: (i, 0)),   # q tile: streams over Nq
            pl.BlockSpec((nkp, dp), lambda i: (0, 0)),      # keys: resident
            pl.BlockSpec((1, nkp), lambda i: (0, 0)),       # ||k||^2: resident
            pl.BlockSpec((nkp, dvp), lambda i: (0, 0)),     # values: resident
        ],
        out_specs=(
            pl.BlockSpec((tq_eff, dvp), lambda i: (i, 0)),  # lane-dense out tile
            pl.BlockSpec((tq_eff, kpad), lambda i: (i, 0)), # lane-dense score tile
        ),
        compiler_params=pltpu.CompilerParams(
            dimension_semantics=("parallel",),              # shard Nq tiles across TCs (v7x)
        ),
    )(q_p, k_p, kk, v_p)

    return out_p[:nq, :dv], score_p[:nq, :topk]


def _reference(query, key, value, topk):
    # Pure-JAX reference mirroring the PyTorch forward (topk softmax branch).
    diff = query[:, None, :] - key[None, :, :]
    dist = jnp.sqrt(jnp.maximum(jnp.sum(diff * diff, axis=-1), 0.0))
    neg = -dist
    val, idx = jax.lax.top_k(neg, topk)
    score = jax.nn.softmax(val, axis=1)
    attn = jnp.zeros_like(neg)
    attn = attn.at[jnp.arange(query.shape[0])[:, None], idx].set(score)
    out = attn @ value
    return out, score


if __name__ == "__main__":
    Nq, Nk, D, Dv, K = 8, 16, 32, 32, 4

    key0 = jax.random.PRNGKey(0)
    kq, kk_, kv = jax.random.split(key0, 3)
    query = jax.random.normal(kq, (Nq, D), dtype=jnp.float32)
    keym = jax.random.normal(kk_, (Nk, D), dtype=jnp.float32)
    value = jax.random.normal(kv, (Nk, Dv), dtype=jnp.float32)

    out, score = euclidean_attention(query, keym, value, topk=K)
    out = jax.block_until_ready(out)
    score = jax.block_until_ready(score)

    ref_out, ref_score = _reference(query, keym, value, K)
    assert jnp.allclose(out, ref_out, atol=1e-3, rtol=1e-3), "output mismatch"
    assert jnp.allclose(score, ref_score, atol=1e-3, rtol=1e-3), "score mismatch"

    print("KERNEL_OK")
</pallas_src>

<mosaic_0001>
module attributes {stable_mosaic.version = 11 : i64} {
  func.func @_euclid_attn_kernel(%arg0: i32, %arg1: memref<8x128xf32, #tpu.memory_space<vmem>>, %arg2: memref<128x128xf32, #tpu.memory_space<vmem>>, %arg3: memref<1x128xf32, #tpu.memory_space<vmem>>, %arg4: memref<128x128xf32, #tpu.memory_space<vmem>>, %arg5: memref<8x128xf32, #tpu.memory_space<vmem>>, %arg6: memref<8x128xf32, #tpu.memory_space<vmem>>) attributes {dimension_semantics = [#tpu.dimension_semantics<parallel>], iteration_bounds = array<i64: 1>, scalar_prefetch = 0 : i64, scratch_operands = 0 : i64, tpu.core_type = #tpu.core_type<tc>, window_params = [{transform_indices = @transform_0, window_bounds = array<i64: 8, 128>}, {pipeline_mode = #tpu.pipeline_mode<synchronous>, transform_indices = @transform_1, window_bounds = array<i64: 128, 128>}, {pipeline_mode = #tpu.pipeline_mode<synchronous>, transform_indices = @transform_2, window_bounds = array<i64: 1, 128>}, {pipeline_mode = #tpu.pipeline_mode<synchronous>, transform_indices = @transform_3, window_bounds = array<i64: 128, 128>}, {transform_indices = @transform_4, window_bounds = array<i64: 8, 128>}, {transform_indices = @transform_5, window_bounds = array<i64: 8, 128>}]} {
    %c0 = arith.constant 0 : index
    %c0_0 = arith.constant 0 : index
    %0 = vector.load %arg1[%c0, %c0_0] : memref<8x128xf32, #tpu.memory_space<vmem>>, vector<8x128xf32>
    %c0_1 = arith.constant 0 : index
    %c0_2 = arith.constant 0 : index
    %1 = vector.load %arg2[%c0_1, %c0_2] : memref<128x128xf32, #tpu.memory_space<vmem>>, vector<128x128xf32>
    %c0_3 = arith.constant 0 : index
    %c0_4 = arith.constant 0 : index
    %2 = vector.load %arg3[%c0_3, %c0_4] : memref<1x128xf32, #tpu.memory_space<vmem>>, vector<1x128xf32>
    %c0_5 = arith.constant 0 : index
    %c0_6 = arith.constant 0 : index
    %3 = vector.load %arg4[%c0_5, %c0_6] : memref<128x128xf32, #tpu.memory_space<vmem>>, vector<128x128xf32>
    %4 = arith.mulf %0, %0 : vector<8x128xf32>
    %cst = arith.constant dense<0.000000e+00> : vector<8xf32>
    %5 = vector.multi_reduction <add>, %4, %cst [1] : vector<8x128xf32> to vector<8xf32>
    %6 = vector.shape_cast %5 : vector<8xf32> to vector<8x1xf32>
    %cst_7 = arith.constant dense<0.000000e+00> : vector<8x128xf32>
    %7 = tpu.matmul %0, %1, %cst_7 {dimension_numbers = #tpu.dot_dimension_numbers<[1], [1], [0], [0], [0, 0, 1, 0], [], []>} : vector<8x128xf32>, vector<128x128xf32>, vector<8x128xf32> -> vector<8x128xf32>
    %8 = vector.broadcast %6 : vector<8x1xf32> to vector<8x128xf32>
    %9 = vector.broadcast %2 : vector<1x128xf32> to vector<8x128xf32>
    %10 = arith.addf %8, %9 : vector<8x128xf32>
    %cst_8 = arith.constant 2.000000e+00 : f32
    %11 = vector.broadcast %cst_8 : f32 to vector<8x128xf32>
    %12 = arith.mulf %11, %7 : vector<8x128xf32>
    %13 = arith.subf %10, %12 : vector<8x128xf32>
    %cst_9 = arith.constant 0.000000e+00 : f32
    %14 = vector.broadcast %cst_9 : f32 to vector<8x128xf32>
    %15 = arith.maximumf %13, %14 : vector<8x128xf32>
    %cst_10 = arith.constant 0.000000e+00 : f32
    %16 = vector.broadcast %cst_10 : f32 to vector<8x128xf32>
    %17 = arith.subf %16, %15 : vector<8x128xf32>
    %18 = tpu.iota {dimensions = array<i32: 1>} : vector<8x128xi32>
    %19 = tpu.iota {dimensions = array<i32: 1>} : vector<8x128xi32>
    %cst_11 = arith.constant 0.000000e+00 : f32
    %20 = vector.broadcast %cst_11 : f32 to vector<8x128xf32>
    %cst_12 = arith.constant 0.000000e+00 : f32
    %21 = vector.broadcast %cst_12 : f32 to vector<8x128xf32>
    %cst_13 = arith.constant 0.000000e+00 : f32
    %22 = vector.broadcast %cst_13 : f32 to vector<8x1xf32>
    %cst_14 = arith.constant dense<0xFF800000> : vector<8xf32>
    %23 = vector.multi_reduction <maximumf>, %17, %cst_14 [1] : vector<8x128xf32> to vector<8xf32>
    %24 = vector.shape_cast %23 : vector<8xf32> to vector<8x1xf32>
    %25 = vector.broadcast %24 : vector<8x1xf32> to vector<8x128xf32>
    %26 = arith.cmpf oeq, %17, %25 : vector<8x128xf32>
    %c128_i32 = arith.constant 128 : i32
    %27 = vector.broadcast %c128_i32 : i32 to vector<8x128xi32>
    %28 = arith.select %26, %18, %27 : vector<8x128xi1>, vector<8x128xi32>
    %cst_15 = arith.constant dense<2147483647> : vector<8xi32>
    %29 = vector.multi_reduction <minsi>, %28, %cst_15 [1] : vector<8x128xi32> to vector<8xi32>
    %30 = vector.shape_cast %29 : vector<8xi32> to vector<8x1xi32>
    %31 = vector.broadcast %30 : vector<8x1xi32> to vector<8x128xi32>
    %32 = arith.cmpi eq, %18, %31 : vector<8x128xi32>
    %cst_16 = arith.constant 0.000000e+00 : f32
    %33 = vector.broadcast %cst_16 : f32 to vector<8x1xf32>
    %34 = arith.subf %33, %24 : vector<8x1xf32>
    %cst_17 = arith.constant 0.000000e+00 : f32
    %35 = vector.broadcast %cst_17 : f32 to vector<8x1xf32>
    %36 = arith.maximumf %34, %35 : vector<8x1xf32>
    %37 = math.sqrt %36 : vector<8x1xf32>
    %cst_18 = arith.constant 0.000000e+00 : f32
    %38 = vector.broadcast %cst_18 : f32 to vector<8x1xf32>
    %39 = arith.subf %38, %37 : vector<8x1xf32>
    %cst_19 = arith.constant 1.000000e+00 : f32
    %40 = vector.broadcast %cst_19 : f32 to vector<8x1xf32>
    %41 = arith.addf %22, %40 : vector<8x1xf32>
    %cst_20 = arith.constant 0.000000e+00 : f32
    %42 = vector.shape_cast %40 : vector<8x1xf32> to vector<8x1xf32>
    %43 = vector.broadcast %42 : vector<8x1xf32> to vector<8x128xf32>
    %44 = vector.broadcast %cst_20 : f32 to vector<8x128xf32>
    %45 = arith.select %32, %43, %44 : vector<8x128xi1>, vector<8x128xf32>
    %46 = arith.addf %20, %45 : vector<8x128xf32>
    %c0_i32 = arith.constant 0 : i32
    %47 = vector.broadcast %c0_i32 : i32 to vector<8x128xi32>
    %48 = arith.cmpi eq, %19, %47 : vector<8x128xi32>
    %cst_21 = arith.constant 0.000000e+00 : f32
    %49 = vector.shape_cast %40 : vector<8x1xf32> to vector<8x1xf32>
    %50 = vector.broadcast %49 : vector<8x1xf32> to vector<8x128xf32>
    %51 = vector.broadcast %cst_21 : f32 to vector<8x128xf32>
    %52 = arith.select %48, %50, %51 : vector<8x128xi1>, vector<8x128xf32>
    %53 = arith.addf %21, %52 : vector<8x128xf32>
    %cst_22 = arith.constant 0xFF800000 : f32
    %54 = vector.broadcast %cst_22 : f32 to vector<8x128xf32>
    %55 = arith.select %32, %54, %17 : vector<8x128xi1>, vector<8x128xf32>
    %cst_23 = arith.constant dense<0xFF800000> : vector<8xf32>
    %56 = vector.multi_reduction <maximumf>, %55, %cst_23 [1] : vector<8x128xf32> to vector<8xf32>
    %57 = vector.shape_cast %56 : vector<8xf32> to vector<8x1xf32>
    %58 = vector.broadcast %57 : vector<8x1xf32> to vector<8x128xf32>
    %59 = arith.cmpf oeq, %55, %58 : vector<8x128xf32>
    %c128_i32_24 = arith.constant 128 : i32
    %60 = vector.broadcast %c128_i32_24 : i32 to vector<8x128xi32>
    %61 = arith.select %59, %18, %60 : vector<8x128xi1>, vector<8x128xi32>
    %cst_25 = arith.constant dense<2147483647> : vector<8xi32>
    %62 = vector.multi_reduction <minsi>, %61, %cst_25 [1] : vector<8x128xi32> to vector<8xi32>
    %63 = vector.shape_cast %62 : vector<8xi32> to vector<8x1xi32>
    %64 = vector.broadcast %63 : vector<8x1xi32> to vector<8x128xi32>
    %65 = arith.cmpi eq, %18, %64 : vector<8x128xi32>
    %cst_26 = arith.constant 0.000000e+00 : f32
    %66 = vector.broadcast %cst_26 : f32 to vector<8x1xf32>
    %67 = arith.subf %66, %57 : vector<8x1xf32>
    %cst_27 = arith.constant 0.000000e+00 : f32
    %68 = vector.broadcast %cst_27 : f32 to vector<8x1xf32>
    %69 = arith.maximumf %67, %68 : vector<8x1xf32>
    %70 = math.sqrt %69 : vector<8x1xf32>
    %cst_28 = arith.constant 0.000000e+00 : f32
    %71 = vector.broadcast %cst_28 : f32 to vector<8x1xf32>
    %72 = arith.subf %71, %70 : vector<8x1xf32>
    %73 = arith.subf %72, %39 : vector<8x1xf32>
    %74 = math.exp %73 : vector<8x1xf32>
    %75 = arith.addf %41, %74 : vector<8x1xf32>
    %cst_29 = arith.constant 0.000000e+00 : f32
    %76 = vector.shape_cast %74 : vector<8x1xf32> to vector<8x1xf32>
    %77 = vector.broadcast %76 : vector<8x1xf32> to vector<8x128xf32>
    %78 = vector.broadcast %cst_29 : f32 to vector<8x128xf32>
    %79 = arith.select %65, %77, %78 : vector<8x128xi1>, vector<8x128xf32>
    %80 = arith.addf %46, %79 : vector<8x128xf32>
    %c1_i32 = arith.constant 1 : i32
    %81 = vector.broadcast %c1_i32 : i32 to vector<8x128xi32>
    %82 = arith.cmpi eq, %19, %81 : vector<8x128xi32>
    %cst_30 = arith.constant 0.000000e+00 : f32
    %83 = vector.shape_cast %74 : vector<8x1xf32> to vector<8x1xf32>
    %84 = vector.broadcast %83 : vector<8x1xf32> to vector<8x128xf32>
    %85 = vector.broadcast %cst_30 : f32 to vector<8x128xf32>
    %86 = arith.select %82, %84, %85 : vector<8x128xi1>, vector<8x128xf32>
    %87 = arith.addf %53, %86 : vector<8x128xf32>
    %cst_31 = arith.constant 0xFF800000 : f32
    %88 = vector.broadcast %cst_31 : f32 to vector<8x128xf32>
    %89 = arith.select %65, %88, %55 : vector<8x128xi1>, vector<8x128xf32>
    %cst_32 = arith.constant dense<0xFF800000> : vector<8xf32>
    %90 = vector.multi_reduction <maximumf>, %89, %cst_32 [1] : vector<8x128xf32> to vector<8xf32>
    %91 = vector.shape_cast %90 : vector<8xf32> to vector<8x1xf32>
    %92 = vector.broadcast %91 : vector<8x1xf32> to vector<8x128xf32>
    %93 = arith.cmpf oeq, %89, %92 : vector<8x128xf32>
    %c128_i32_33 = arith.constant 128 : i32
    %94 = vector.broadcast %c128_i32_33 : i32 to vector<8x128xi32>
    %95 = arith.select %93, %18, %94 : vector<8x128xi1>, vector<8x128xi32>
    %cst_34 = arith.constant dense<2147483647> : vector<8xi32>
    %96 = vector.multi_reduction <minsi>, %95, %cst_34 [1] : vector<8x128xi32> to vector<8xi32>
    %97 = vector.shape_cast %96 : vector<8xi32> to vector<8x1xi32>
    %98 = vector.broadcast %97 : vector<8x1xi32> to vector<8x128xi32>
    %99 = arith.cmpi eq, %18, %98 : vector<8x128xi32>
    %cst_35 = arith.constant 0.000000e+00 : f32
    %100 = vector.broadcast %cst_35 : f32 to vector<8x1xf32>
    %101 = arith.subf %100, %91 : vector<8x1xf32>
    %cst_36 = arith.constant 0.000000e+00 : f32
    %102 = vector.broadcast %cst_36 : f32 to vector<8x1xf32>
    %103 = arith.maximumf %101, %102 : vector<8x1xf32>
    %104 = math.sqrt %103 : vector<8x1xf32>
    %cst_37 = arith.constant 0.000000e+00 : f32
    %105 = vector.broadcast %cst_37 : f32 to vector<8x1xf32>
    %106 = arith.subf %105, %104 : vector<8x1xf32>
    %107 = arith.subf %106, %39 : vector<8x1xf32>
    %108 = math.exp %107 : vector<8x1xf32>
    %109 = arith.addf %75, %108 : vector<8x1xf32>
    %cst_38 = arith.constant 0.000000e+00 : f32
    %110 = vector.shape_cast %108 : vector<8x1xf32> to vector<8x1xf32>
    %111 = vector.broadcast %110 : vector<8x1xf32> to vector<8x128xf32>
    %112 = vector.broadcast %cst_38 : f32 to vector<8x128xf32>
    %113 = arith.select %99, %111, %112 : vector<8x128xi1>, vector<8x128xf32>
    %114 = arith.addf %80, %113 : vector<8x128xf32>
    %c2_i32 = arith.constant 2 : i32
    %115 = vector.broadcast %c2_i32 : i32 to vector<8x128xi32>
    %116 = arith.cmpi eq, %19, %115 : vector<8x128xi32>
    %cst_39 = arith.constant 0.000000e+00 : f32
    %117 = vector.shape_cast %108 : vector<8x1xf32> to vector<8x1xf32>
    %118 = vector.broadcast %117 : vector<8x1xf32> to vector<8x128xf32>
    %119 = vector.broadcast %cst_39 : f32 to vector<8x128xf32>
    %120 = arith.select %116, %118, %119 : vector<8x128xi1>, vector<8x128xf32>
    %121 = arith.addf %87, %120 : vector<8x128xf32>
    %cst_40 = arith.constant 0xFF800000 : f32
    %122 = vector.broadcast %cst_40 : f32 to vector<8x128xf32>
    %123 = arith.select %99, %122, %89 : vector<8x128xi1>, vector<8x128xf32>
    %cst_41 = arith.constant dense<0xFF800000> : vector<8xf32>
    %124 = vector.multi_reduction <maximumf>, %123, %cst_41 [1] : vector<8x128xf32> to vector<8xf32>
    %125 = vector.shape_cast %124 : vector<8xf32> to vector<8x1xf32>
    %126 = vector.broadcast %125 : vector<8x1xf32> to vector<8x128xf32>
    %127 = arith.cmpf oeq, %123, %126 : vector<8x128xf32>
    %c128_i32_42 = arith.constant 128 : i32
    %128 = vector.broadcast %c128_i32_42 : i32 to vector<8x128xi32>
    %129 = arith.select %127, %18, %128 : vector<8x128xi1>, vector<8x128xi32>
    %cst_43 = arith.constant dense<2147483647> : vector<8xi32>
    %130 = vector.multi_reduction <minsi>, %129, %cst_43 [1] : vector<8x128xi32> to vector<8xi32>
    %131 = vector.shape_cast %130 : vector<8xi32> to vector<8x1xi32>
    %132 = vector.broadcast %131 : vector<8x1xi32> to vector<8x128xi32>
    %133 = arith.cmpi eq, %18, %132 : vector<8x128xi32>
    %cst_44 = arith.constant 0.000000e+00 : f32
    %134 = vector.broadcast %cst_44 : f32 to vector<8x1xf32>
    %135 = arith.subf %134, %125 : vector<8x1xf32>
    %cst_45 = arith.constant 0.000000e+00 : f32
    %136 = vector.broadcast %cst_45 : f32 to vector<8x1xf32>
    %137 = arith.maximumf %135, %136 : vector<8x1xf32>
    %138 = math.sqrt %137 : vector<8x1xf32>
    %cst_46 = arith.constant 0.000000e+00 : f32
    %139 = vector.broadcast %cst_46 : f32 to vector<8x1xf32>
    %140 = arith.subf %139, %138 : vector<8x1xf32>
    %141 = arith.subf %140, %39 : vector<8x1xf32>
    %142 = math.exp %141 : vector<8x1xf32>
    %143 = arith.addf %109, %142 : vector<8x1xf32>
    %cst_47 = arith.constant 0.000000e+00 : f32
    %144 = vector.shape_cast %142 : vector<8x1xf32> to vector<8x1xf32>
    %145 = vector.broadcast %144 : vector<8x1xf32> to vector<8x128xf32>
    %146 = vector.broadcast %cst_47 : f32 to vector<8x128xf32>
    %147 = arith.select %133, %145, %146 : vector<8x128xi1>, vector<8x128xf32>
    %148 = arith.addf %114, %147 : vector<8x128xf32>
    %c3_i32 = arith.constant 3 : i32
    %149 = vector.broadcast %c3_i32 : i32 to vector<8x128xi32>
    %150 = arith.cmpi eq, %19, %149 : vector<8x128xi32>
    %cst_48 = arith.constant 0.000000e+00 : f32
    %151 = vector.shape_cast %142 : vector<8x1xf32> to vector<8x1xf32>
    %152 = vector.broadcast %151 : vector<8x1xf32> to vector<8x128xf32>
    %153 = vector.broadcast %cst_48 : f32 to vector<8x128xf32>
    %154 = arith.select %150, %152, %153 : vector<8x128xi1>, vector<8x128xf32>
    %155 = arith.addf %121, %154 : vector<8x128xf32>
    %156 = tpu.reciprocal %143 {approx = true} : vector<8x1xf32> -> vector<8x1xf32>
    %157 = arith.mulf %143, %156 : vector<8x1xf32>
    %cst_49 = arith.constant 2.000000e+00 : f32
    %158 = vector.broadcast %cst_49 : f32 to vector<8x1xf32>
    %159 = arith.subf %158, %157 : vector<8x1xf32>
    %160 = arith.mulf %156, %159 : vector<8x1xf32>
    %161 = vector.broadcast %160 : vector<8x1xf32> to vector<8x128xf32>
    %162 = arith.mulf %148, %161 : vector<8x128xf32>
    %cst_50 = arith.constant dense<0.000000e+00> : vector<8x128xf32>
    %163 = tpu.matmul %162, %3, %cst_50 {dimension_numbers = #tpu.dot_dimension_numbers<[1], [0], [0], [1], [0, 0, 1, 1], [], []>} : vector<8x128xf32>, vector<128x128xf32>, vector<8x128xf32> -> vector<8x128xf32>
    %c0_51 = arith.constant 0 : index
    %c0_52 = arith.constant 0 : index
    %164 = vector.load %arg5[%c0_51, %c0_52] : memref<8x128xf32, #tpu.memory_space<vmem>>, vector<8x128xf32>
    tpu.vector_store %arg5[%c0_51, %c0_52], %163 {strides = array<i32>} : memref<8x128xf32, #tpu.memory_space<vmem>>, vector<8x128xf32>,
    %165 = vector.broadcast %160 : vector<8x1xf32> to vector<8x128xf32>
    %166 = arith.mulf %155, %165 : vector<8x128xf32>
    %c0_53 = arith.constant 0 : index
    %c0_54 = arith.constant 0 : index
    %167 = vector.load %arg6[%c0_53, %c0_54] : memref<8x128xf32, #tpu.memory_space<vmem>>, vector<8x128xf32>
    tpu.vector_store %arg6[%c0_53, %c0_54], %166 {strides = array<i32>} : memref<8x128xf32, #tpu.memory_space<vmem>>, vector<8x128xf32>,
    return
  }
  func.func @transform_0(%arg0: i32) -> (i32, i32) {
    %c0_i32 = arith.constant 0 : i32
    %c0_i32_0 = arith.constant 0 : i32
    return %arg0, %c0_i32 : i32, i32
  }
  func.func @transform_1(%arg0: i32) -> (i32, i32) {
    %c0_i32 = arith.constant 0 : i32
    %c0_i32_0 = arith.constant 0 : i32
    %c0_i32_1 = arith.constant 0 : i32
    return %c0_i32, %c0_i32_0 : i32, i32
  }
  func.func @transform_2(%arg0: i32) -> (i32, i32) {
    %c0_i32 = arith.constant 0 : i32
    %c0_i32_0 = arith.constant 0 : i32
    %c0_i32_1 = arith.constant 0 : i32
    return %c0_i32, %c0_i32_0 : i32, i32
  }
  func.func @transform_3(%arg0: i32) -> (i32, i32) {
    %c0_i32 = arith.constant 0 : i32
    %c0_i32_0 = arith.constant 0 : i32
    %c0_i32_1 = arith.constant 0 : i32
    return %c0_i32, %c0_i32_0 : i32, i32
  }
  func.func @transform_4(%arg0: i32) -> (i32, i32) {
    %c0_i32 = arith.constant 0 : i32
    %c0_i32_0 = arith.constant 0 : i32
    return %arg0, %c0_i32 : i32, i32
  }
  func.func @transform_5(%arg0: i32) -> (i32, i32) {
    %c0_i32 = arith.constant 0 : i32
    %c0_i32_0 = arith.constant 0 : i32
    return %arg0, %c0_i32 : i32, i32
  }
}

</mosaic_0001>

<llo_original>
// kernel: tpu_custom_call.1
$region0: #{tpu_custom_call.1}
  #allocation0 [shape = 'u32[]', space=smem, size = 0x4, offset = 0x4, fixed_abs, tag = 'smem constant byte address 0x4 - core index']
  #allocation1 [shape = 'u32[144,128]{1,0:T(1,128)}', space=vmem, size = 0x12000, scoped, tag = 'internal scratch']
  %s0 = inlined_call_operand.hbm [shape: f32[8,128], index: 0, kind: input, shape index: {}]
  %s1 = inlined_call_operand.hbm [shape: f32[128,128], index: 1, kind: input, shape index: {}]
  %s2 = inlined_call_operand.vmem [shape: f32[1,128], index: 2, kind: input, shape index: {}]
  %s3 = inlined_call_operand.hbm [shape: f32[128,128], index: 3, kind: input, shape index: {}]
  %s4 = inlined_call_operand.hbm [shape: f32[8,128], index: 4, kind: output, shape index: {0}]
  %s5 = inlined_call_operand.hbm [shape: f32[8,128], index: 5, kind: output, shape index: {1}]
  %6 = xla_tuple %s4, %s5
  %s7 = sld [smem:[#allocation0]]
  $region46: #{tpu_custom_call.1} parent=0
    _
  %s9 = ssub.s32 1, %s7
  %s10 = scalar_select 0, %s9, %s7
  $region1: #{tpu_custom_call.1} parent=0
    #allocation2 [shape = 'u8[4096]{0}', space=vmem, size = 0x1000, scoped, tag = 'input window, operand 0, single buffered']
    #allocation3 [shape = 's32[1]{0}', space=sflag, size = 0x4, scoped, tag = 'scoped memory for tpu_custom_call.1']
    #allocation4 [shape = 's32[1]{0}', space=sflag, size = 0x4, scoped, tag = 'scoped memory for tpu_custom_call.1']
    #allocation5 [shape = 'u8[65536]{0}', space=vmem, size = 0x10000, scoped, tag = 'input window, operand 1, single buffered']
    #allocation6 [shape = 's32[1]{0}', space=sflag, size = 0x4, scoped, tag = 'scoped memory for tpu_custom_call.1']
    #allocation7 [shape = 'u8[65536]{0}', space=vmem, size = 0x10000, scoped, tag = 'input window, operand 3, single buffered']
    #allocation8 [shape = 'u8[4096]{0}', space=vmem, size = 0x1000, scoped, tag = 'output window, operand 0, single buffered']
    #allocation9 [shape = 'u8[4096]{0}', space=vmem, size = 0x1000, scoped, tag = 'output window, operand 1, single buffered']
    #allocation10 [shape = 's32[1]{0}', space=sflag, size = 0x4, scoped, tag = 'scoped memory for tpu_custom_call.1']
    %11 = vsyncpa [#allocation3], 0
    %12 = vsyncpa [#allocation6], 0
    %13 = vsyncpa [#allocation4], 0
    %14 = vsyncpa [#allocation10], 0
    // Predicated region
    $region2: #{tpu_custom_call.1} parent=1 // pred_check
      _
    $region3: #{tpu_custom_call.1} parent=1 // pred_check_branch
      %16 = sbr.rel (0) target = $region5
    $region4: #{tpu_custom_call.1} parent=1 // pred_region
      %s18 = ssub.s32 128, 128
      %19 = vsyncadd [#allocation3], %s18
      %s21 = sshll.u32 [#allocation2], 4
      %s22 = int_to_ptr.vmem [resolvable:$true] %s21
      %24 = dma.hbm_to_vmem [thread:$0]  %s0, 128, %s22, [#allocation3]
    $region5: #{tpu_custom_call.1} parent=1 // pred_fallthru
      _
    // Predicated region
    $region6: #{tpu_custom_call.1} parent=1 // pred_check
      _
    $region7: #{tpu_custom_call.1} parent=1 // pred_check_branch
      %26 = sbr.rel (0) target = $region9
    $region8: #{tpu_custom_call.1} parent=1 // pred_region
      %s28 = ssub.s32 2048, 2048
      %29 = vsyncadd [#allocation6], %s28
      %s30 = sshll.u32 [#allocation5], 4
      %s31 = int_to_ptr.vmem [resolvable:$true] %s30
      %36 = dma.hbm_to_vmem [thread:$0]  %s1, 2048, %s31, [#allocation6], 128, 128, 8
    $region9: #{tpu_custom_call.1} parent=1 // pred_fallthru
      _
    // Predicated region
    $region10: #{tpu_custom_call.1} parent=1 // pred_check
      _
    $region11: #{tpu_custom_call.1} parent=1 // pred_check_branch
      %38 = sbr.rel (0) target = $region13
    $region12: #{tpu_custom_call.1} parent=1 // pred_region
      _
    $region13: #{tpu_custom_call.1} parent=1 // pred_fallthru
      _
    // Predicated region
    $region14: #{tpu_custom_call.1} parent=1 // pred_check
      _
    $region15: #{tpu_custom_call.1} parent=1 // pred_check_branch
      %40 = sbr.rel (0) target = $region17
    $region16: #{tpu_custom_call.1} parent=1 // pred_region
      %s42 = ssub.s32 2048, 2048
      %43 = vsyncadd [#allocation6], %s42
      %s44 = sshll.u32 [#allocation7], 4
      %s45 = int_to_ptr.vmem [resolvable:$true] %s44
      %50 = dma.hbm_to_vmem [thread:$0]  %s3, 2048, %s45, [#allocation6], 128, 128, 8
    $region17: #{tpu_custom_call.1} parent=1 // pred_fallthru
      _
    // Predicated region
    $region18: #{tpu_custom_call.1} parent=1 // pred_check
      _
    $region19: #{tpu_custom_call.1} parent=1 // pred_check_branch
      %52 = sbr.rel (0) target = $region21
    $region20: #{tpu_custom_call.1} parent=1 // pred_region
      %53 = dma.done [#allocation3], 128
    $region21: #{tpu_custom_call.1} parent=1 // pred_fallthru
      _
    // Predicated region
    $region22: #{tpu_custom_call.1} parent=1 // pred_check
      _
    $region23: #{tpu_custom_call.1} parent=1 // pred_check_branch
      %55 = sbr.rel (0) target = $region25
    $region24: #{tpu_custom_call.1} parent=1 // pred_region
      %56 = dma.done [#allocation6], 2048
    $region25: #{tpu_custom_call.1} parent=1 // pred_fallthru
      _
    // Predicated region
    $region26: #{tpu_custom_call.1} parent=1 // pred_check
      _
    $region27: #{tpu_custom_call.1} parent=1 // pred_check_branch
      %58 = sbr.rel (0) target = $region29
    $region28: #{tpu_custom_call.1} parent=1 // pred_region
      %59 = dma.done [#allocation6], 2048
    $region29: #{tpu_custom_call.1} parent=1 // pred_fallthru
      _
    %v60 = vld [vmem:[#allocation2] sm:$0xff]
    %v61 = vld [vmem:[#allocation5] sm:$0xff]
    %v62 = vld [vmem:[#allocation5 + $0x8] sm:$0xff]
    %v63 = vld [vmem:[#allocation5 + $0x10] sm:$0xff]
    %v64 = vld [vmem:[#allocation5 + $0x18] sm:$0xff]
    %v65 = vld [vmem:[#allocation5 + $0x20] sm:$0xff]
    %v66 = vld [vmem:[#allocation5 + $0x28] sm:$0xff]
    %v67 = vld [vmem:[#allocation5 + $0x30] sm:$0xff]
    %v68 = vld [vmem:[#allocation5 + $0x38] sm:$0xff]
    %v69 = vld [vmem:[#allocation5 + $0x40] sm:$0xff]
    %v70 = vld [vmem:[#allocation5 + $0x48] sm:$0xff]
    %v71 = vld [vmem:[#allocation5 + $0x50] sm:$0xff]
    %v72 = vld [vmem:[#allocation5 + $0x58] sm:$0xff]
    %v73 = vld [vmem:[#allocation5 + $0x60] sm:$0xff]
    %v74 = vld [vmem:[#allocation5 + $0x68] sm:$0xff]
    %v75 = vld [vmem:[#allocation5 + $0x70] sm:$0xff]
    %v76 = vld [vmem:[#allocation5 + $0x78] sm:$0xff]
    %v77 = vld [vmem:[%s2] sm:$0x1]
    %v78 = vld [vmem:[#allocation7] sm:$0xff]
    %v79 = vld [vmem:[#allocation7 + $0x8] sm:$0xff]
    %v80 = vld [vmem:[#allocation7 + $0x10] sm:$0xff]
    %v81 = vld [vmem:[#allocation7 + $0x18] sm:$0xff]
    %v82 = vld [vmem:[#allocation7 + $0x20] sm:$0xff]
    %v83 = vld [vmem:[#allocation7 + $0x28] sm:$0xff]
    %v84 = vld [vmem:[#allocation7 + $0x30] sm:$0xff]
    %v85 = vld [vmem:[#allocation7 + $0x38] sm:$0xff]
    %v86 = vld [vmem:[#allocation7 + $0x40] sm:$0xff]
    %v87 = vld [vmem:[#allocation7 + $0x48] sm:$0xff]
    %v88 = vld [vmem:[#allocation7 + $0x50] sm:$0xff]
    %v89 = vld [vmem:[#allocation7 + $0x58] sm:$0xff]
    %v90 = vld [vmem:[#allocation7 + $0x60] sm:$0xff]
    %v91 = vld [vmem:[#allocation7 + $0x68] sm:$0xff]
    %v92 = vld [vmem:[#allocation7 + $0x70] sm:$0xff]
    %v93 = vld [vmem:[#allocation7 + $0x78] sm:$0xff]
    %v94 = vmul.f32 %v60, %v60
    %95 = vadd.xlane.f32.xlu0 %v94
    %v96 = vpop.xlane.xlu0 %95
    %97 = vmatprep.subr.mxu0 0.0
    %98 = vmatpush1.xpose.msra.mxu0 %v61
    %99 = vmatprep.subr.mxu0 0.0
    %100 = vmatpush1.xpose.msra.mxu0 %v62
    %101 = vmatprep.subr.mxu0 0.0
    %102 = vmatpush1.xpose.msra.mxu0 %v63
    %103 = vmatprep.subr.mxu0 0.0
    %104 = vmatpush1.xpose.msra.mxu0 %v64
    %105 = vmatprep.subr.mxu0 0.0
    %106 = vmatpush1.xpose.msra.mxu0 %v65
    %107 = vmatprep.subr.mxu0 0.0
    %108 = vmatpush1.xpose.msra.mxu0 %v66
    %109 = vmatprep.subr.mxu0 0.0
    %110 = vmatpush1.xpose.msra.mxu0 %v67
    %111 = vmatprep.subr.mxu0 0.0
    %112 = vmatpush1.xpose.msra.mxu0 %v68
    %113 = vmatprep.subr.mxu0 0.0
    %114 = vmatpush1.xpose.msra.mxu0 %v69
    %115 = vmatprep.subr.mxu0 0.0
    %116 = vmatpush1.xpose.msra.mxu0 %v70
    %117 = vmatprep.subr.mxu0 0.0
    %118 = vmatpush1.xpose.msra.mxu0 %v71
    %119 = vmatprep.subr.mxu0 0.0
    %120 = vmatpush1.xpose.msra.mxu0 %v72
    %121 = vmatprep.subr.mxu0 0.0
    %122 = vmatpush1.xpose.msra.mxu0 %v73
    %123 = vmatprep.subr.mxu0 0.0
    %124 = vmatpush1.xpose.msra.mxu0 %v74
    %125 = vmatprep.subr.mxu0 0.0
    %126 = vmatpush1.xpose.msra.mxu0 %v75
    %127 = vmatprep.subr.mxu0 0.0
    %128 = vmatpush1.xpose.msra.mxu0 %v76
    %129 = vmatprep.subr.mxu0 0.0
    %130 = vmatpush1.xpose.msra.mxu0 0.0
    %131 = vmatprep.subr.mxu0 0.0
    %132 = vmatpush1.xpose.msra.mxu0 0.0
    %133 = vmatprep.subr.mxu0 0.0
    %134 = vmatpush1.xpose.msra.mxu0 0.0
    %135 = vmatprep.subr.mxu0 0.0
    %136 = vmatpush1.xpose.msra.mxu0 0.0
    %137 = vmatprep.subr.mxu0 0.0
    %138 = vmatpush1.xpose.msra.mxu0 0.0
    %139 = vmatprep.subr.mxu0 0.0
    %140 = vmatpush1.xpose.msra.mxu0 0.0
    %141 = vmatprep.subr.mxu0 0.0
    %142 = vmatpush1.xpose.msra.mxu0 0.0
    %143 = vmatprep.subr.mxu0 0.0
    %144 = vmatpush1.xpose.msra.mxu0 0.0
    %145 = vmatprep.subr.mxu0 0.0
    %146 = vmatpush1.xpose.msra.mxu0 0.0
    %147 = vmatprep.subr.mxu0 0.0
    %148 = vmatpush1.xpose.msra.mxu0 0.0
    %149 = vmatprep.subr.mxu0 0.0
    %150 = vmatpush1.xpose.msra.mxu0 0.0
    %151 = vmatprep.subr.mxu0 0.0
    %152 = vmatpush1.xpose.msra.mxu0 0.0
    %153 = vmatprep.subr.mxu0 0.0
    %154 = vmatpush1.xpose.msra.mxu0 0.0
    %155 = vmatprep.subr.mxu0 0.0
    %156 = vmatpush1.xpose.msra.mxu0 0.0
    %157 = vmatprep.subr.mxu0 0.0
    %158 = vmatpush1.xpose.msra.mxu0 0.0
    %159 = vmatprep.subr.mxu0 0.0
    %160 = vmatpush1.xpose.msra.mxu0 0.0
    %161 = vmatprep.mubr.f32.mxu0 0.0
    %162 = vmatmul.mubr.f32.gmra.mrb[0].mxu0 %v60
    %v163 = vpop.f32.mrb[0].mxu0
    %v164 = vadd.f32 0.0, %v163
    %v165 = vpop.f32.mrb[0].mxu0
    %166 = vdwg.mxu0
    %v168 = vlaneseq
    %v169 = vshrl.u32 %v168, 7
    %v170 = vsub.s32 0, %v169
    %v171 = vrot.slane %v77, %v170
    %v173 = vadd.f32 %v96, %v171
    %v174 = vmul.f32 %v164, 2.0
    %v175 = vsub.f32 %v173, %v174
    %v176 = vmax.f32 %v175, 0.0
    %v177 = vsub.f32 0.0, %v176
    %v178 = vlaneseq
    %v179 = vand.u32 %v178, 127
    %180 = vmax.xlane.f32.xlu0 %v177
    %v181 = vpop.xlane.xlu0 %180
    %vm182 = vcmp.eq.f32.partialorder %v177, %v181
    %v183 = vsel %vm182, %v179, 128
    %v184 = vand.u32 %v183, 65535
    %v185 = vshra.s32 %v183, 16
    %v186 = vcvt.s32.f32 %v184
    %v187 = vcvt.s32.f32 %v185
    %188 = vmin.xlane.f32.xlu0 %v187
    %v189 = vpop.xlane.xlu0 %188
    %vm190 = vcmp.eq.f32.partialorder %v187, %v189
    %v191 = vsel %vm190, %v186, inf
    %192 = vmin.xlane.f32.xlu0 %v191
    %v193 = vpop.xlane.xlu0 %192
    %v194 = vcvt.f32.s32 %v193
    %v195 = vcvt.f32.s32 %v189
    %v196 = vshll.u32 %v195, 16
    %v197 = vadd.s32 %v196, %v194
    %vm198 = vcmp.eq.s32.totalorder %v179, %v197
    %v199 = vsub.f32 0.0, %v181
    %v200 = vmax.f32 %v199, 0.0
    %v201 = vrsqrt.pop %v200
    %v202 = vmul.f32 %v200, %v201
    %vm203 = vcmp.eq.f32.partialorder %v200, inf
    %v204 = vsel %vm203, %v200, %v202
    %vm205 = vcmp.eq.f32.partialorder %v200, 0.0
    %v206 = vand.u32 %v200, 2147483648
    %v207 = vsel %vm205, %v206, %v204
    %v208 = vsub.f32 0.0, %v207
    %v209 = vsel %vm198, 1.0, 0.0
    %v210 = vadd.f32 %v209, 0.0
    %vm211 = vcmp.eq.s32.totalorder %v179, 0
    %v212 = vsel %vm211, 1.0, 0.0
    %v213 = vadd.f32 %v212, 0.0
    %v214 = vsel %vm198, -inf, %v177
    %215 = vmax.xlane.f32.xlu0 %v214
    %v216 = vpop.xlane.xlu0 %215
    %vm217 = vcmp.eq.f32.partialorder %v214, %v216
    %v218 = vsel %vm217, %v179, 128
    %v219 = vand.u32 %v218, 65535
    %v220 = vshra.s32 %v218, 16
    %v221 = vcvt.s32.f32 %v219
    %v222 = vcvt.s32.f32 %v220
    %223 = vmin.xlane.f32.xlu0 %v222
    %v224 = vpop.xlane.xlu0 %223
    %vm225 = vcmp.eq.f32.partialorder %v222, %v224
    %v226 = vsel %vm225, %v221, inf
    %227 = vmin.xlane.f32.xlu0 %v226
    %v228 = vpop.xlane.xlu0 %227
    %v229 = vcvt.f32.s32 %v228
    %v230 = vcvt.f32.s32 %v224
    %v231 = vshll.u32 %v230, 16
    %v232 = vadd.s32 %v231, %v229
    %vm233 = vcmp.eq.s32.totalorder %v179, %v232
    %v234 = vsub.f32 0.0, %v216
    %v235 = vmax.f32 %v234, 0.0
    %v236 = vrsqrt.pop %v235
    %v237 = vmul.f32 %v235, %v236
    %vm238 = vcmp.eq.f32.partialorder %v235, inf
    %v239 = vsel %vm238, %v235, %v237
    %vm240 = vcmp.eq.f32.partialorder %v235, 0.0
    %v241 = vand.u32 %v235, 2147483648
    %v242 = vsel %vm240, %v241, %v239
    %v243 = vsub.f32 0.0, %v242
    %v244 = vsub.f32 %v243, %v208
    %v245 = vmul.f32 %v244, 1.442695
    %v246 = vpow.pop %v245
    %v247 = vadd.f32 %v246, 1.0
    %v248 = vsel %vm233, %v246, 0.0
    %v249 = vadd.f32 %v210, %v248
    %vm250 = vcmp.eq.s32.totalorder %v179, 1
    %v251 = vsel %vm250, %v246, 0.0
    %v252 = vadd.f32 %v213, %v251
    %v253 = vsel %vm233, -inf, %v214
    %254 = vmax.xlane.f32.xlu0 %v253
    %v255 = vpop.xlane.xlu0 %254
    %vm256 = vcmp.eq.f32.partialorder %v253, %v255
    %v257 = vsel %vm256, %v179, 128
    %v258 = vand.u32 %v257, 65535
    %v259 = vshra.s32 %v257, 16
    %v260 = vcvt.s32.f32 %v258
    %v261 = vcvt.s32.f32 %v259
    %262 = vmin.xlane.f32.xlu0 %v261
    %v263 = vpop.xlane.xlu0 %262
    %vm264 = vcmp.eq.f32.partialorder %v261, %v263
    %v265 = vsel %vm264, %v260, inf
    %266 = vmin.xlane.f32.xlu0 %v265
    %v267 = vpop.xlane.xlu0 %266
    %v268 = vcvt.f32.s32 %v267
    %v269 = vcvt.f32.s32 %v263
    %v270 = vshll.u32 %v269, 16
    %v271 = vadd.s32 %v270, %v268
    %vm272 = vcmp.eq.s32.totalorder %v179, %v271
    %v273 = vsub.f32 0.0, %v255
    %v274 = vmax.f32 %v273, 0.0
    %v275 = vrsqrt.pop %v274
    %v276 = vmul.f32 %v274, %v275
    %vm277 = vcmp.eq.f32.partialorder %v274, inf
    %v278 = vsel %vm277, %v274, %v276
    %vm279 = vcmp.eq.f32.partialorder %v274, 0.0
    %v280 = vand.u32 %v274, 2147483648
    %v281 = vsel %vm279, %v280, %v278
    %v282 = vsub.f32 0.0, %v281
    %v283 = vsub.f32 %v282, %v208
    %v284 = vmul.f32 %v283, 1.442695
    %v285 = vpow.pop %v284
    %v286 = vadd.f32 %v247, %v285
    %v287 = vsel %vm272, %v285, 0.0
    %v288 = vadd.f32 %v249, %v287
    %vm289 = vcmp.eq.s32.totalorder %v179, 2
    %v290 = vsel %vm289, %v285, 0.0
    %v291 = vadd.f32 %v252, %v290
    %v292 = vsel %vm272, -inf, %v253
    %293 = vmax.xlane.f32.xlu0 %v292
    %v294 = vpop.xlane.xlu0 %293
    %vm295 = vcmp.eq.f32.partialorder %v292, %v294
    %v296 = vsel %vm295, %v179, 128
    %v297 = vand.u32 %v296, 65535
    %v298 = vshra.s32 %v296, 16
    %v299 = vcvt.s32.f32 %v297
    %v300 = vcvt.s32.f32 %v298
    %301 = vmin.xlane.f32.xlu0 %v300
    %v302 = vpop.xlane.xlu0 %301
    %vm303 = vcmp.eq.f32.partialorder %v300, %v302
    %v304 = vsel %vm303, %v299, inf
    %305 = vmin.xlane.f32.xlu0 %v304
    %v306 = vpop.xlane.xlu0 %305
    %v307 = vcvt.f32.s32 %v306
    %v308 = vcvt.f32.s32 %v302
    %v309 = vshll.u32 %v308, 16
    %v310 = vadd.s32 %v309, %v307
    %vm311 = vcmp.eq.s32.totalorder %v179, %v310
    %v312 = vsub.f32 0.0, %v294
    %v313 = vmax.f32 %v312, 0.0
    %v314 = vrsqrt.pop %v313
    %v315 = vmul.f32 %v313, %v314
    %vm316 = vcmp.eq.f32.partialorder %v313, inf
    %v317 = vsel %vm316, %v313, %v315
    %vm318 = vcmp.eq.f32.partialorder %v313, 0.0
    %v319 = vand.u32 %v313, 2147483648
    %v320 = vsel %vm318, %v319, %v317
    %v321 = vsub.f32 0.0, %v320
    %v322 = vsub.f32 %v321, %v208
    %v323 = vmul.f32 %v322, 1.442695
    %v324 = vpow.pop %v323
    %v325 = vadd.f32 %v286, %v324
    %v326 = vsel %vm311, %v324, 0.0
    %v327 = vadd.f32 %v288, %v326
    %vm328 = vcmp.eq.s32.totalorder %v179, 3
    %v329 = vsel %vm328, %v324, 0.0
    %v330 = vadd.f32 %v291, %v329
    %v331 = vrcp.pop %v325
    %v332 = vmul.f32 %v325, %v331
    %v333 = vsub.f32 2.0, %v332
    %v334 = vmul.f32 %v331, %v333
    %v335 = vmul.f32 %v327, %v334
    %336 = vmatprep.subr.mxu0 0.0
    %337 = vmatpush1.msra.mxu0 %v78
    %338 = vmatprep.subr.mxu0 0.0
    %339 = vmatpush1.msra.mxu0 %v79
    %340 = vmatprep.subr.mxu0 0.0
    %341 = vmatpush1.msra.mxu0 %v80
    %342 = vmatprep.subr.mxu0 0.0
    %343 = vmatpush1.msra.mxu0 %v81
    %344 = vmatprep.subr.mxu0 0.0
    %345 = vmatpush1.msra.mxu0 %v82
    %346 = vmatprep.subr.mxu0 0.0
    %347 = vmatpush1.msra.mxu0 %v83
    %348 = vmatprep.subr.mxu0 0.0
    %349 = vmatpush1.msra.mxu0 %v84
    %350 = vmatprep.subr.mxu0 0.0
    %351 = vmatpush1.msra.mxu0 %v85
    %352 = vmatprep.subr.mxu0 0.0
    %353 = vmatpush1.msra.mxu0 %v86
    %354 = vmatprep.subr.mxu0 0.0
    %355 = vmatpush1.msra.mxu0 %v87
    %356 = vmatprep.subr.mxu0 0.0
    %357 = vmatpush1.msra.mxu0 %v88
    %358 = vmatprep.subr.mxu0 0.0
    %359 = vmatpush1.msra.mxu0 %v89
    %360 = vmatprep.subr.mxu0 0.0
    %361 = vmatpush1.msra.mxu0 %v90
    %362 = vmatprep.subr.mxu0 0.0
    %363 = vmatpush1.msra.mxu0 %v91
    %364 = vmatprep.subr.mxu0 0.0
    %365 = vmatpush1.msra.mxu0 %v92
    %366 = vmatprep.subr.mxu0 0.0
    %367 = vmatpush1.msra.mxu0 %v93
    %368 = vmatprep.subr.mxu0 0.0
    %369 = vmatpush1.msra.mxu0 0.0
    %370 = vmatprep.subr.mxu0 0.0
    %371 = vmatpush1.msra.mxu0 0.0
    %372 = vmatprep.subr.mxu0 0.0
    %373 = vmatpush1.msra.mxu0 0.0
    %374 = vmatprep.subr.mxu0 0.0
    %375 = vmatpush1.msra.mxu0 0.0
    %376 = vmatprep.subr.mxu0 0.0
    %377 = vmatpush1.msra.mxu0 0.0
    %378 = vmatprep.subr.mxu0 0.0
    %379 = vmatpush1.msra.mxu0 0.0
    %380 = vmatprep.subr.mxu0 0.0
    %381 = vmatpush1.msra.mxu0 0.0
    %382 = vmatprep.subr.mxu0 0.0
    %383 = vmatpush1.msra.mxu0 0.0
    %384 = vmatprep.subr.mxu0 0.0
    %385 = vmatpush1.msra.mxu0 0.0
    %386 = vmatprep.subr.mxu0 0.0
    %387 = vmatpush1.msra.mxu0 0.0
    %388 = vmatprep.subr.mxu0 0.0
    %389 = vmatpush1.msra.mxu0 0.0
    %390 = vmatprep.subr.mxu0 0.0
    %391 = vmatpush1.msra.mxu0 0.0
    %392 = vmatprep.subr.mxu0 0.0
    %393 = vmatpush1.msra.mxu0 0.0
    %394 = vmatprep.subr.mxu0 0.0
    %395 = vmatpush1.msra.mxu0 0.0
    %396 = vmatprep.subr.mxu0 0.0
    %397 = vmatpush1.msra.mxu0 0.0
    %398 = vmatprep.subr.mxu0 0.0
    %399 = vmatpush1.msra.mxu0 0.0
    %400 = vmatprep.mubr.f32.mxu0 0.0
    %401 = vmatmul.mubr.f32.gmra.mrb[0].mxu0 %v335
    %v402 = vpop.f32.mrb[0].mxu0
    %v403 = vadd.f32 0.0, %v402
    %v404 = vpop.f32.mrb[0].mxu0
    %405 = vdwg.mxu0
    %406 = vst [vmem:[#allocation8] sm:$0xff] %v403
    %v407 = vmul.f32 %v330, %v334
    %408 = vst [vmem:[#allocation9] sm:$0xff] %v407
    // Predicated region
    $region30: #{tpu_custom_call.1} parent=1 // pred_check
      _
    $region31: #{tpu_custom_call.1} parent=1 // pred_check_branch
      %410 = sbr.rel (0) target = $region33
    $region32: #{tpu_custom_call.1} parent=1 // pred_region
      %s412 = ssub.s32 128, 128
      %413 = vsyncadd [#allocation4], %s412
      %s415 = sshll.u32 [#allocation8], 4
      %s416 = int_to_ptr.vmem [resolvable:$true] %s415
      %418 = dma.vmem_to_hbm [thread:$0]  %s416, 128, %s4, [#allocation4]
    $region33: #{tpu_custom_call.1} parent=1 // pred_fallthru
      _
    // Predicated region
    $region34: #{tpu_custom_call.1} parent=1 // pred_check
      _
    $region35: #{tpu_custom_call.1} parent=1 // pred_check_branch
      %420 = sbr.rel (0) target = $region37
    $region36: #{tpu_custom_call.1} parent=1 // pred_region
      %s422 = ssub.s32 128, 128
      %423 = vsyncadd [#allocation10], %s422
      %s425 = sshll.u32 [#allocation9], 4
      %s426 = int_to_ptr.vmem [resolvable:$true] %s425
      %428 = dma.vmem_to_hbm [thread:$0]  %s426, 128, %s5, [#allocation10]
    $region37: #{tpu_custom_call.1} parent=1 // pred_fallthru
      _
    // Predicated region
    $region38: #{tpu_custom_call.1} parent=1 // pred_check
      _
    $region39: #{tpu_custom_call.1} parent=1 // pred_check_branch
      %430 = sbr.rel (0) target = $region41
    $region40: #{tpu_custom_call.1} parent=1 // pred_region
      %431 = dma.done [#allocation4], 128
    $region41: #{tpu_custom_call.1} parent=1 // pred_fallthru
      _
    // Predicated region
    $region42: #{tpu_custom_call.1} parent=1 // pred_check
      _
    $region43: #{tpu_custom_call.1} parent=1 // pred_check_branch
      %433 = sbr.rel (0) target = $region45
    $region44: #{tpu_custom_call.1} parent=1 // pred_region
      %434 = dma.done [#allocation10], 128
    $region45: #{tpu_custom_call.1} parent=1 // pred_fallthru
      _
    %435 = vsyncpa [#allocation3], 1
    %436 = vsyncpa [#allocation6], 1
    %437 = vsyncpa [#allocation4], 1
    %438 = vsyncpa [#allocation10], 1

</llo_original>
